<compile_context>
chip_gen: v7x
topology: tpu7x:2x2x1
jax: 0.10.0
libtpu: 0.0.40
codegen_flags: <defaults>
</compile_context>

<pallas_src>
import math

import jax
import jax.numpy as jnp
from jax.experimental import pallas as pl
from jax.experimental.pallas import tpu as pltpu


def critic_kernel(s_ref, a_ref, w1s_ref, w1a_ref, b1_ref,
                  w2_ref, b2_ref, w3_ref, b3_ref, q_ref):
    # bf16 MXU operands, f32 accumulation; ReLUs / bias adds on the VPU in f32
    # (v5e VPU has no bf16 path).
    s = s_ref[...].astype(jnp.bfloat16)
    a = a_ref[...].astype(jnp.bfloat16)

    # Layer 1: split-weight matmul replaces concat([state, action]) @ W1.
    h1 = (jnp.dot(s, w1s_ref[...], preferred_element_type=jnp.float32)
          + jnp.dot(a, w1a_ref[...], preferred_element_type=jnp.float32)
          + b1_ref[...])
    h1 = jnp.maximum(h1, 0.0).astype(jnp.bfloat16)

    # Layer 2.
    h2 = jnp.dot(h1, w2_ref[...], preferred_element_type=jnp.float32) + b2_ref[...]
    h2 = jnp.maximum(h2, 0.0)

    # Layer 3 (fc2 -> 1): VPU multiply + cross-lane (XLU) reduction avoids an
    # N=1 MXU matmul; stored lane-dense as a (1, tm) block (batch along lanes).
    q = jnp.sum(h2 * w3_ref[...], axis=-1)                       # (tm,)
    q_ref[...] = (q[None, :] + b3_ref[...]).astype(q_ref.dtype)  # (1, tm)


def critic_forward(state, action, params, *, block_b=128):
    """state: (B, S) f32, action: (B, A) f32 -> q: (B, 1) f32."""
    w1s, w1a, b1, w2, b2, w3, b3 = params
    B, S = state.shape
    A = action.shape[1]
    fc1 = w1s.shape[1]
    fc2 = w2.shape[1]

    # Batch tiling: full-extent tile for small batches, otherwise block_b-row
    # tiles (multiple of 8/128) with zero-padding of the ragged tail.
    if B <= block_b:
        tm, Bp = B, B
    else:
        tm = block_b
        Bp = pl.cdiv(B, tm) * tm
        if Bp != B:
            state = jnp.pad(state, ((0, Bp - B), (0, 0)))
            action = jnp.pad(action, ((0, Bp - B), (0, 0)))
    grid = (Bp // tm,)

    batch_map = lambda i: (i, 0)   # activations: tile over batch rows
    const_map = lambda i: (0, 0)   # weights/biases: VMEM-resident across steps

    q = pl.pallas_call(
        critic_kernel,
        out_shape=jax.ShapeDtypeStruct((1, Bp), jnp.float32),
        grid_spec=pltpu.PrefetchScalarGridSpec(
            num_scalar_prefetch=0,
            grid=grid,
            in_specs=[
                pl.BlockSpec((tm, S), batch_map),     # state tile
                pl.BlockSpec((tm, A), batch_map),     # action tile
                pl.BlockSpec((S, fc1), const_map),    # W1 (state rows), bf16
                pl.BlockSpec((A, fc1), const_map),    # W1 (action rows), bf16
                pl.BlockSpec((1, fc1), const_map),    # b1
                pl.BlockSpec((fc1, fc2), const_map),  # W2, bf16
                pl.BlockSpec((1, fc2), const_map),    # b2
                pl.BlockSpec((1, fc2), const_map),    # W3 as a row vector
                pl.BlockSpec((1, 1), const_map),      # b3
            ],
            out_specs=pl.BlockSpec((1, tm), lambda i: (0, i)),  # lane-dense q
        ),
        compiler_params=pltpu.CompilerParams(
            dimension_semantics=("parallel",)),
    )(state, action, w1s, w1a, b1, w2, b2, w3, b3)

    # (1, Bp) lane-dense kernel output -> (B, 1) to match the PyTorch module.
    return q[0, :B].reshape(B, 1)


def init_params(key, state_dim, action_dim, fc1_dims, fc2_dims):
    """PyTorch Linear-style init U(-1/sqrt(fan_in), +1/sqrt(fan_in)).

    fc1 is drawn as one (S+A, fc1) matrix (fan_in = S+A, matching the module's
    LazyLinear over concat([state, action])) and then split by input feature so
    the kernel never needs a concat. MXU weight operands are stored in bf16.
    """
    ks = jax.random.split(key, 6)
    in_dim = state_dim + action_dim

    def uniform(k, shape, fan_in):
        bound = 1.0 / math.sqrt(fan_in)
        return jax.random.uniform(k, shape, jnp.float32, -bound, bound)

    w1 = uniform(ks[0], (in_dim, fc1_dims), in_dim)
    b1 = uniform(ks[1], (1, fc1_dims), in_dim)
    w2 = uniform(ks[2], (fc1_dims, fc2_dims), fc1_dims)
    b2 = uniform(ks[3], (1, fc2_dims), fc1_dims)
    w3 = uniform(ks[4], (1, fc2_dims), fc2_dims)  # (fc2 -> 1) weight as a row
    b3 = uniform(ks[5], (1, 1), fc2_dims)

    w1s = w1[:state_dim].astype(jnp.bfloat16)
    w1a = w1[state_dim:].astype(jnp.bfloat16)
    w2 = w2.astype(jnp.bfloat16)
    return (w1s, w1a, b1, w2, b2, w3, b3)


if __name__ == "__main__":
    # Small demo shapes (module default fc dims are 512; 256 keeps the demo
    # small while staying MXU/lane aligned).  B=256 with block_b=128 exercises
    # the 2-step pipelined grid.
    B, STATE_DIM, ACTION_DIM = 256, 24, 8
    FC1_DIMS, FC2_DIMS = 256, 256
    # TODO(synk): checkpoint save/load paths of the PyTorch module are not translated.

    key = jax.random.PRNGKey(0)
    k_state, k_action, k_params = jax.random.split(key, 3)

    state = jax.random.normal(k_state, (B, STATE_DIM), jnp.float32)
    action = jax.random.normal(k_action, (B, ACTION_DIM), jnp.float32)
    params = init_params(k_params, STATE_DIM, ACTION_DIM, FC1_DIMS, FC2_DIMS)

    q = critic_forward(state, action, params, block_b=128)
    q = jax.block_until_ready(q)

    # Pure-JAX reference of the same (bf16 matmul, f32 accumulate) forward.
    w1s, w1a, b1, w2, b2, w3, b3 = params
    sb = state.astype(jnp.bfloat16)
    ab = action.astype(jnp.bfloat16)
    h1 = (jnp.dot(sb, w1s, preferred_element_type=jnp.float32)
          + jnp.dot(ab, w1a, preferred_element_type=jnp.float32) + b1)
    h1 = jnp.maximum(h1, 0.0).astype(jnp.bfloat16)
    h2 = jnp.dot(h1, w2, preferred_element_type=jnp.float32) + b2
    h2 = jnp.maximum(h2, 0.0)
    q_ref = jnp.sum(h2 * w3, axis=-1, keepdims=True) + b3

    assert q.shape == (B, 1)
    err = float(jnp.max(jnp.abs(q - q_ref)))
    assert jnp.allclose(q, q_ref, atol=2e-3, rtol=2e-2), f"max abs err = {err}"

    print("KERNEL_OK")
</pallas_src>

<mosaic_0001>
module attributes {stable_mosaic.version = 11 : i64} {
  func.func @critic_kernel(%arg0: i32, %arg1: memref<128x24xf32, #tpu.memory_space<vmem>>, %arg2: memref<128x8xf32, #tpu.memory_space<vmem>>, %arg3: memref<24x256xbf16, #tpu.memory_space<vmem>>, %arg4: memref<8x256xbf16, #tpu.memory_space<vmem>>, %arg5: memref<1x256xf32, #tpu.memory_space<vmem>>, %arg6: memref<256x256xbf16, #tpu.memory_space<vmem>>, %arg7: memref<1x256xf32, #tpu.memory_space<vmem>>, %arg8: memref<1x256xf32, #tpu.memory_space<vmem>>, %arg9: memref<1x1xf32, #tpu.memory_space<vmem>>, %arg10: memref<1x128xf32, #tpu.memory_space<vmem>>) attributes {dimension_semantics = [#tpu.dimension_semantics<parallel>], iteration_bounds = array<i64: 2>, scalar_prefetch = 0 : i64, scratch_operands = 0 : i64, tpu.core_type = #tpu.core_type<tc>, window_params = [{transform_indices = @transform_0, window_bounds = array<i64: 128, 24>}, {transform_indices = @transform_1, window_bounds = array<i64: 128, 8>}, {pipeline_mode = #tpu.pipeline_mode<synchronous>, transform_indices = @transform_2, window_bounds = array<i64: 24, 256>}, {pipeline_mode = #tpu.pipeline_mode<synchronous>, transform_indices = @transform_3, window_bounds = array<i64: 8, 256>}, {pipeline_mode = #tpu.pipeline_mode<synchronous>, transform_indices = @transform_4, window_bounds = array<i64: 1, 256>}, {pipeline_mode = #tpu.pipeline_mode<synchronous>, transform_indices = @transform_5, window_bounds = array<i64: 256, 256>}, {pipeline_mode = #tpu.pipeline_mode<synchronous>, transform_indices = @transform_6, window_bounds = array<i64: 1, 256>}, {pipeline_mode = #tpu.pipeline_mode<synchronous>, transform_indices = @transform_7, window_bounds = array<i64: 1, 256>}, {pipeline_mode = #tpu.pipeline_mode<synchronous>, transform_indices = @transform_8, window_bounds = array<i64: 1, 1>}, {transform_indices = @transform_9, window_bounds = array<i64: 1, 128>}]} {
    %c0 = arith.constant 0 : index
    %c0_0 = arith.constant 0 : index
    %0 = vector.load %arg1[%c0, %c0_0] : memref<128x24xf32, #tpu.memory_space<vmem>>, vector<128x24xf32>
    %1 = arith.truncf %0 : vector<128x24xf32> to vector<128x24xbf16>
    %c0_1 = arith.constant 0 : index
    %c0_2 = arith.constant 0 : index
    %2 = vector.load %arg2[%c0_1, %c0_2] : memref<128x8xf32, #tpu.memory_space<vmem>>, vector<128x8xf32>
    %3 = arith.truncf %2 : vector<128x8xf32> to vector<128x8xbf16>
    %c0_3 = arith.constant 0 : index
    %c0_4 = arith.constant 0 : index
    %4 = vector.load %arg3[%c0_3, %c0_4] : memref<24x256xbf16, #tpu.memory_space<vmem>>, vector<24x256xbf16>
    %cst = arith.constant dense<0.000000e+00> : vector<128x256xf32>
    %5 = tpu.matmul %1, %4, %cst {dimension_numbers = #tpu.dot_dimension_numbers<[1], [0], [0], [1], [0, 0, 1, 1], [], []>} : vector<128x24xbf16>, vector<24x256xbf16>, vector<128x256xf32> -> vector<128x256xf32>
    %c0_5 = arith.constant 0 : index
    %c0_6 = arith.constant 0 : index
    %6 = vector.load %arg4[%c0_5, %c0_6] : memref<8x256xbf16, #tpu.memory_space<vmem>>, vector<8x256xbf16>
    %cst_7 = arith.constant dense<0.000000e+00> : vector<128x256xf32>
    %7 = tpu.matmul %3, %6, %cst_7 {dimension_numbers = #tpu.dot_dimension_numbers<[1], [0], [0], [1], [0, 0, 1, 1], [], []>} : vector<128x8xbf16>, vector<8x256xbf16>, vector<128x256xf32> -> vector<128x256xf32>
    %8 = arith.addf %5, %7 : vector<128x256xf32>
    %c0_8 = arith.constant 0 : index
    %c0_9 = arith.constant 0 : index
    %9 = vector.load %arg5[%c0_8, %c0_9] : memref<1x256xf32, #tpu.memory_space<vmem>>, vector<1x256xf32>
    %10 = vector.broadcast %9 : vector<1x256xf32> to vector<128x256xf32>
    %11 = arith.addf %8, %10 : vector<128x256xf32>
    %cst_10 = arith.constant 0.000000e+00 : f32
    %12 = vector.broadcast %cst_10 : f32 to vector<128x256xf32>
    %13 = arith.maximumf %11, %12 : vector<128x256xf32>
    %14 = arith.truncf %13 : vector<128x256xf32> to vector<128x256xbf16>
    %c0_11 = arith.constant 0 : index
    %c0_12 = arith.constant 0 : index
    %15 = vector.load %arg6[%c0_11, %c0_12] : memref<256x256xbf16, #tpu.memory_space<vmem>>, vector<256x256xbf16>
    %cst_13 = arith.constant dense<0.000000e+00> : vector<128x256xf32>
    %16 = tpu.matmul %14, %15, %cst_13 {dimension_numbers = #tpu.dot_dimension_numbers<[1], [0], [0], [1], [0, 0, 1, 1], [], []>} : vector<128x256xbf16>, vector<256x256xbf16>, vector<128x256xf32> -> vector<128x256xf32>
    %c0_14 = arith.constant 0 : index
    %c0_15 = arith.constant 0 : index
    %17 = vector.load %arg7[%c0_14, %c0_15] : memref<1x256xf32, #tpu.memory_space<vmem>>, vector<1x256xf32>
    %18 = vector.broadcast %17 : vector<1x256xf32> to vector<128x256xf32>
    %19 = arith.addf %16, %18 : vector<128x256xf32>
    %cst_16 = arith.constant 0.000000e+00 : f32
    %20 = vector.broadcast %cst_16 : f32 to vector<128x256xf32>
    %21 = arith.maximumf %19, %20 : vector<128x256xf32>
    %c0_17 = arith.constant 0 : index
    %c0_18 = arith.constant 0 : index
    %22 = vector.load %arg8[%c0_17, %c0_18] : memref<1x256xf32, #tpu.memory_space<vmem>>, vector<1x256xf32>
    %23 = vector.broadcast %22 : vector<1x256xf32> to vector<128x256xf32>
    %24 = arith.mulf %21, %23 : vector<128x256xf32>
    %cst_19 = arith.constant dense<0.000000e+00> : vector<128xf32>
    %25 = vector.multi_reduction <add>, %24, %cst_19 [1] : vector<128x256xf32> to vector<128xf32>
    %26 = vector.shape_cast %25 : vector<128xf32> to vector<1x128xf32>
    %c0_20 = arith.constant 0 : index
    %c0_21 = arith.constant 0 : index
    %27 = vector.load %arg9[%c0_20, %c0_21] : memref<1x1xf32, #tpu.memory_space<vmem>>, vector<1x1xf32>
    %28 = vector.broadcast %27 : vector<1x1xf32> to vector<1x128xf32>
    %29 = arith.addf %26, %28 : vector<1x128xf32>
    %c0_22 = arith.constant 0 : index
    %c0_23 = arith.constant 0 : index
    %30 = vector.load %arg10[%c0_22, %c0_23] : memref<1x128xf32, #tpu.memory_space<vmem>>, vector<1x128xf32>
    tpu.vector_store %arg10[%c0_22, %c0_23], %29 {strides = array<i32>} : memref<1x128xf32, #tpu.memory_space<vmem>>, vector<1x128xf32>,
    return
  }
  func.func @transform_0(%arg0: i32) -> (i32, i32) {
    %c0_i32 = arith.constant 0 : i32
    %c0_i32_0 = arith.constant 0 : i32
    return %arg0, %c0_i32 : i32, i32
  }
  func.func @transform_1(%arg0: i32) -> (i32, i32) {
    %c0_i32 = arith.constant 0 : i32
    %c0_i32_0 = arith.constant 0 : i32
    return %arg0, %c0_i32 : i32, i32
  }
  func.func @transform_2(%arg0: i32) -> (i32, i32) {
    %c0_i32 = arith.constant 0 : i32
    %c0_i32_0 = arith.constant 0 : i32
    %c0_i32_1 = arith.constant 0 : i32
    return %c0_i32, %c0_i32_0 : i32, i32
  }
  func.func @transform_3(%arg0: i32) -> (i32, i32) {
    %c0_i32 = arith.constant 0 : i32
    %c0_i32_0 = arith.constant 0 : i32
    %c0_i32_1 = arith.constant 0 : i32
    return %c0_i32, %c0_i32_0 : i32, i32
  }
  func.func @transform_4(%arg0: i32) -> (i32, i32) {
    %c0_i32 = arith.constant 0 : i32
    %c0_i32_0 = arith.constant 0 : i32
    %c0_i32_1 = arith.constant 0 : i32
    return %c0_i32, %c0_i32_0 : i32, i32
  }
  func.func @transform_5(%arg0: i32) -> (i32, i32) {
    %c0_i32 = arith.constant 0 : i32
    %c0_i32_0 = arith.constant 0 : i32
    %c0_i32_1 = arith.constant 0 : i32
    return %c0_i32, %c0_i32_0 : i32, i32
  }
  func.func @transform_6(%arg0: i32) -> (i32, i32) {
    %c0_i32 = arith.constant 0 : i32
    %c0_i32_0 = arith.constant 0 : i32
    %c0_i32_1 = arith.constant 0 : i32
    return %c0_i32, %c0_i32_0 : i32, i32
  }
  func.func @transform_7(%arg0: i32) -> (i32, i32) {
    %c0_i32 = arith.constant 0 : i32
    %c0_i32_0 = arith.constant 0 : i32
    %c0_i32_1 = arith.constant 0 : i32
    return %c0_i32, %c0_i32_0 : i32, i32
  }
  func.func @transform_8(%arg0: i32) -> (i32, i32) {
    %c0_i32 = arith.constant 0 : i32
    %c0_i32_0 = arith.constant 0 : i32
    %c0_i32_1 = arith.constant 0 : i32
    return %c0_i32, %c0_i32_0 : i32, i32
  }
  func.func @transform_9(%arg0: i32) -> (i32, i32) {
    %c0_i32 = arith.constant 0 : i32
    %c0_i32_0 = arith.constant 0 : i32
    return %c0_i32, %arg0 : i32, i32
  }
}

</mosaic_0001>

<llo_original>
// kernel: tpu_custom_call.1
$region0: #{tpu_custom_call.1}
  #allocation0 [shape = 'u32[]', space=smem, size = 0x4, offset = 0x4, fixed_abs, tag = 'smem constant byte address 0x4 - core index']
  #allocation1 [shape = 'u32[144,128]{1,0:T(1,128)}', space=vmem, size = 0x12000, scoped, tag = 'internal scratch']
  #allocation2 [shape = 'f32[1,1]{1,0:T(1,128)S(1)}', space=vmem, size = 0x200, scoped, tag = 'scoped memory for tpu_custom_call.1']
  %s0 = inlined_call_operand.vmem [shape: f32[256,24], index: 0, kind: input, shape index: {}]
  %s1 = inlined_call_operand.vmem [shape: f32[256,8], index: 1, kind: input, shape index: {}]
  %s2 = inlined_call_operand.vmem [shape: bf16[24,256], index: 2, kind: input, shape index: {}]
  %s3 = inlined_call_operand.vmem [shape: bf16[8,256], index: 3, kind: input, shape index: {}]
  %s4 = inlined_call_operand.vmem [shape: f32[1,256], index: 4, kind: input, shape index: {}]
  %s5 = inlined_call_operand.vmem [shape: bf16[256,256], index: 5, kind: input, shape index: {}]
  %s6 = inlined_call_operand.vmem [shape: f32[1,256], index: 6, kind: input, shape index: {}]
  %s7 = inlined_call_operand.vmem [shape: f32[1,256], index: 7, kind: input, shape index: {}]
  %s8 = inlined_call_operand.<no memory space> [shape: f32[1,1], index: 8, kind: input, shape index: {}]
  %s9 = inlined_call_operand.hbm [shape: f32[1,256], index: 9, kind: output, shape index: {}]
  %s10 = sld [smem:[#allocation0]]
  $region69: #{tpu_custom_call.1} parent=0
    _
  %s12 = ssub.s32 1, %s10
  %s13 = scalar_select 0, %s12, %s10
  %v14 = vstv %s8
  %15 = vst [vmem:[#allocation2] sm:$0x1] %v14
  $region1: #{tpu_custom_call.1} parent=0
    #allocation3 [shape = 'u8[1024]{0}', space=vmem, size = 0x400, scoped, tag = 'output window, operand 0']
    #allocation4 [shape = 's32[2]{0}', space=sflag, size = 0x8, scoped, tag = 'scoped memory for tpu_custom_call.1']
    %16 = vsyncpa [#allocation4], 0
    %s17 = scalar_lea.sflag [#allocation4], 1
    %18 = vsyncpa %s17, 0
    loop: start=0, step=1, limit=4
    $region2: #{tpu_custom_call.1} parent=1 // loop_pre_header
      _
    $region3: #{tpu_custom_call.1} parent=1 // loop_header
      %s20 = sphi 0, %s24
      %p21 = scmp.ge.s32.totalorder %s20, 4
      %s30 = sphi 0, %s32
      %s33 = sphi 0, %s30
      %s34 = sphi 0, %s33
      %s50 = sphi 0, %s34
      %s56 = sphi 0, %s58
      %s59 = sphi 0, %s56
      %s60 = sphi 0, %s59
      %s76 = sphi 0, %s60
      %s80 = sphi 0, %s80
      %s82 = sphi 0, %s80
      %s83 = sphi 0, %s82
      %s97 = sphi 0, %s83
      %s101 = sphi 0, %s101
      %s103 = sphi 0, %s101
      %s104 = sphi 0, %s103
      %s118 = sphi 0, %s104
      %s122 = sphi 0, %s122
      %s124 = sphi 0, %s122
      %s125 = sphi 0, %s124
      %s139 = sphi 0, %s125
      %s143 = sphi 0, %s143
      %s145 = sphi 0, %s143
      %s146 = sphi 0, %s145
      %s160 = sphi 0, %s146
      %s164 = sphi 0, %s164
      %s166 = sphi 0, %s164
      %s167 = sphi 0, %s166
      %s181 = sphi 0, %s167
      %s185 = sphi 0, %s185
      %s187 = sphi 0, %s185
      %s188 = sphi 0, %s187
      %s202 = sphi 0, %s188
      %s206 = sphi 0, %s206
      %s208 = sphi 0, %s206
      %s209 = sphi 0, %s208
      %s223 = sphi 0, %s209
      %s229 = sphi 0, %s231
      %s232 = sphi 0, %s229
      %s233 = sphi 0, %s232
      %s249 = sphi 0, %s233
    $region4: #{tpu_custom_call.1} parent=1 // loop_header_branch
      %23 = sbr.rel (%p21) target = $region8
    $region5: #{tpu_custom_call.1} parent=1 // loop_body
      %s25 = ssub.s32 %s20, 1
      %s26 = ssub.s32 %s20, 2
      %s27 = sadd.s32 %s20, 1
      %s28 = ssub.s32 %s20, %s27
      %p29 = scmp.eq.s32.totalorder %s28, 0
      %s31 = sadd.s32 %s30, 1
      %s32 = scalar_select %p29, %s30, %s31
      %p35 = pneg %p29
      %p36 = scmp.eq.s32.totalorder %s20, 1
      %p37 = por %p35, %p36
      %p38 = scmp.ne.s32.totalorder %s30, %s33
      %p39 = scmp.eq.s32.totalorder %s20, 0
      %p40 = por %p38, %p39
      %p41 = scmp.ne.s32.totalorder %s30, %s33
      %p42 = scmp.eq.s32.totalorder %s25, 1
      %p43 = por %p41, %p42
      %p44 = scmp.ne.s32.totalorder %s33, %s34
      %p45 = scmp.eq.s32.totalorder %s25, 0
      %p46 = por %p44, %p45
      %p47 = scmp.ne.s32.totalorder %s33, %s34
      %p48 = scmp.eq.s32.totalorder %s26, 1
      %p49 = por %p47, %p48
      %p51 = scmp.ne.s32.totalorder %s34, %s50
      %p52 = scmp.eq.s32.totalorder %s26, 0
      %p53 = por %p51, %p52
      %s54 = ssub.s32 %s20, %s27
      %p55 = scmp.eq.s32.totalorder %s54, 0
      %s57 = sadd.s32 %s56, 1
      %s58 = scalar_select %p55, %s56, %s57
      %p61 = pneg %p55
      %p62 = scmp.eq.s32.totalorder %s20, 1
      %p63 = por %p61, %p62
      %p64 = scmp.ne.s32.totalorder %s56, %s59
      %p65 = scmp.eq.s32.totalorder %s20, 0
      %p66 = por %p64, %p65
      %p67 = scmp.ne.s32.totalorder %s56, %s59
      %p68 = scmp.eq.s32.totalorder %s25, 1
      %p69 = por %p67, %p68
      %p70 = scmp.ne.s32.totalorder %s59, %s60
      %p71 = scmp.eq.s32.totalorder %s25, 0
      %p72 = por %p70, %p71
      %p73 = scmp.ne.s32.totalorder %s59, %s60
      %p74 = scmp.eq.s32.totalorder %s26, 1
      %p75 = por %p73, %p74
      %p77 = scmp.ne.s32.totalorder %s60, %s76
      %p78 = scmp.eq.s32.totalorder %s26, 0
      %p79 = por %p77, %p78
      %s81 = sadd.s32 %s80, 1
      %p84 = scmp.eq.s32.totalorder %s20, 1
      %p85 = scmp.ne.s32.totalorder %s80, %s82
      %p86 = scmp.eq.s32.totalorder %s20, 0
      %p87 = por %p85, %p86
      %p88 = scmp.ne.s32.totalorder %s80, %s82
      %p89 = scmp.eq.s32.totalorder %s25, 1
      %p90 = por %p88, %p89
      %p91 = scmp.ne.s32.totalorder %s82, %s83
      %p92 = scmp.eq.s32.totalorder %s25, 0
      %p93 = por %p91, %p92
      %p94 = scmp.ne.s32.totalorder %s82, %s83
      %p95 = scmp.eq.s32.totalorder %s26, 1
      %p96 = por %p94, %p95
      %p98 = scmp.ne.s32.totalorder %s83, %s97
      %p99 = scmp.eq.s32.totalorder %s26, 0
      %p100 = por %p98, %p99
      %s102 = sadd.s32 %s101, 1
      %p105 = scmp.eq.s32.totalorder %s20, 1
      %p106 = scmp.ne.s32.totalorder %s101, %s103
      %p107 = scmp.eq.s32.totalorder %s20, 0
      %p108 = por %p106, %p107
      %p109 = scmp.ne.s32.totalorder %s101, %s103
      %p110 = scmp.eq.s32.totalorder %s25, 1
      %p111 = por %p109, %p110
      %p112 = scmp.ne.s32.totalorder %s103, %s104
      %p113 = scmp.eq.s32.totalorder %s25, 0
      %p114 = por %p112, %p113
      %p115 = scmp.ne.s32.totalorder %s103, %s104
      %p116 = scmp.eq.s32.totalorder %s26, 1
      %p117 = por %p115, %p116
      %p119 = scmp.ne.s32.totalorder %s104, %s118
      %p120 = scmp.eq.s32.totalorder %s26, 0
      %p121 = por %p119, %p120
      %s123 = sadd.s32 %s122, 1
      %p126 = scmp.eq.s32.totalorder %s20, 1
      %p127 = scmp.ne.s32.totalorder %s122, %s124
      %p128 = scmp.eq.s32.totalorder %s20, 0
      %p129 = por %p127, %p128
      %p130 = scmp.ne.s32.totalorder %s122, %s124
      %p131 = scmp.eq.s32.totalorder %s25, 1
      %p132 = por %p130, %p131
      %p133 = scmp.ne.s32.totalorder %s124, %s125
      %p134 = scmp.eq.s32.totalorder %s25, 0
      %p135 = por %p133, %p134
      %p136 = scmp.ne.s32.totalorder %s124, %s125
      %p137 = scmp.eq.s32.totalorder %s26, 1
      %p138 = por %p136, %p137
      %p140 = scmp.ne.s32.totalorder %s125, %s139
      %p141 = scmp.eq.s32.totalorder %s26, 0
      %p142 = por %p140, %p141
      %s144 = sadd.s32 %s143, 1
      %p147 = scmp.eq.s32.totalorder %s20, 1
      %p148 = scmp.ne.s32.totalorder %s143, %s145
      %p149 = scmp.eq.s32.totalorder %s20, 0
      %p150 = por %p148, %p149
      %p151 = scmp.ne.s32.totalorder %s143, %s145
      %p152 = scmp.eq.s32.totalorder %s25, 1
      %p153 = por %p151, %p152
      %p154 = scmp.ne.s32.totalorder %s145, %s146
      %p155 = scmp.eq.s32.totalorder %s25, 0
      %p156 = por %p154, %p155
      %p157 = scmp.ne.s32.totalorder %s145, %s146
      %p158 = scmp.eq.s32.totalorder %s26, 1
      %p159 = por %p157, %p158
      %p161 = scmp.ne.s32.totalorder %s146, %s160
      %p162 = scmp.eq.s32.totalorder %s26, 0
      %p163 = por %p161, %p162
      %s165 = sadd.s32 %s164, 1
      %p168 = scmp.eq.s32.totalorder %s20, 1
      %p169 = scmp.ne.s32.totalorder %s164, %s166
      %p170 = scmp.eq.s32.totalorder %s20, 0
      %p171 = por %p169, %p170
      %p172 = scmp.ne.s32.totalorder %s164, %s166
      %p173 = scmp.eq.s32.totalorder %s25, 1
      %p174 = por %p172, %p173
      %p175 = scmp.ne.s32.totalorder %s166, %s167
      %p176 = scmp.eq.s32.totalorder %s25, 0
      %p177 = por %p175, %p176
      %p178 = scmp.ne.s32.totalorder %s166, %s167
      %p179 = scmp.eq.s32.totalorder %s26, 1
      %p180 = por %p178, %p179
      %p182 = scmp.ne.s32.totalorder %s167, %s181
      %p183 = scmp.eq.s32.totalorder %s26, 0
      %p184 = por %p182, %p183
      %s186 = sadd.s32 %s185, 1
      %p189 = scmp.eq.s32.totalorder %s20, 1
      %p190 = scmp.ne.s32.totalorder %s185, %s187
      %p191 = scmp.eq.s32.totalorder %s20, 0
      %p192 = por %p190, %p191
      %p193 = scmp.ne.s32.totalorder %s185, %s187
      %p194 = scmp.eq.s32.totalorder %s25, 1
      %p195 = por %p193, %p194
      %p196 = scmp.ne.s32.totalorder %s187, %s188
      %p197 = scmp.eq.s32.totalorder %s25, 0
      %p198 = por %p196, %p197
      %p199 = scmp.ne.s32.totalorder %s187, %s188
      %p200 = scmp.eq.s32.totalorder %s26, 1
      %p201 = por %p199, %p200
      %p203 = scmp.ne.s32.totalorder %s188, %s202
      %p204 = scmp.eq.s32.totalorder %s26, 0
      %p205 = por %p203, %p204
      %s207 = sadd.s32 %s206, 1
      %p210 = scmp.eq.s32.totalorder %s20, 1
      %p211 = scmp.ne.s32.totalorder %s206, %s208
      %p212 = scmp.eq.s32.totalorder %s20, 0
      %p213 = por %p211, %p212
      %p214 = scmp.ne.s32.totalorder %s206, %s208
      %p215 = scmp.eq.s32.totalorder %s25, 1
      %p216 = por %p214, %p215
      %p217 = scmp.ne.s32.totalorder %s208, %s209
      %p218 = scmp.eq.s32.totalorder %s25, 0
      %p219 = por %p217, %p218
      %p220 = scmp.ne.s32.totalorder %s208, %s209
      %p221 = scmp.eq.s32.totalorder %s26, 1
      %p222 = por %p220, %p221
      %p224 = scmp.ne.s32.totalorder %s209, %s223
      %p225 = scmp.eq.s32.totalorder %s26, 0
      %p226 = por %p224, %p225
      %s227 = ssub.s32 %s20, %s27
      %p228 = scmp.eq.s32.totalorder %s227, 0
      %s230 = sadd.s32 %s229, 1
      %s231 = scalar_select %p228, %s229, %s230
      %p234 = pneg %p228
      %p235 = scmp.eq.s32.totalorder %s20, 1
      %p236 = por %p234, %p235
      %p237 = scmp.ne.s32.totalorder %s229, %s232
      %p238 = scmp.eq.s32.totalorder %s20, 0
      %p239 = por %p237, %p238
      %p240 = scmp.ne.s32.totalorder %s229, %s232
      %p241 = scmp.eq.s32.totalorder %s25, 1
      %p242 = por %p240, %p241
      %p243 = scmp.ne.s32.totalorder %s232, %s233
      %p244 = scmp.eq.s32.totalorder %s25, 0
      %p245 = por %p243, %p244
      %p246 = scmp.ne.s32.totalorder %s232, %s233
      %p247 = scmp.eq.s32.totalorder %s26, 1
      %p248 = por %p246, %p247
      %p250 = scmp.ne.s32.totalorder %s233, %s249
      %p251 = scmp.eq.s32.totalorder %s26, 0
      %p252 = por %p250, %p251
      %p253 = scmp.le.s32.totalorder 1, %s20
      %p254 = scmp.lt.s32.totalorder %s20, 3
      %p255 = pnand %p253, %p254
      %p256 = pneg %p255
      // Predicated region
      $region9: #{tpu_custom_call.1} parent=5 // pred_check
        _
      $region10: #{tpu_custom_call.1} parent=5 // pred_check_branch
        %258 = sbr.rel (%p255) target = $region12
      $region11: #{tpu_custom_call.1} parent=5 // pred_region
        %s259 = ssub.s32 %s20, 1
        // Predicated region
        $region13: #{tpu_custom_call.1} parent=11 // pred_check
          %p260 = pneg %p93
        $region14: #{tpu_custom_call.1} parent=11 // pred_check_branch
          %262 = sbr.rel (%p260) target = $region16
        $region15: #{tpu_custom_call.1} parent=11 // pred_region
          _
        $region16: #{tpu_custom_call.1} parent=11 // pred_fallthru
          _
        // Predicated region
        $region17: #{tpu_custom_call.1} parent=11 // pred_check
          %p263 = pneg %p114
        $region18: #{tpu_custom_call.1} parent=11 // pred_check_branch
          %265 = sbr.rel (%p263) target = $region20
        $region19: #{tpu_custom_call.1} parent=11 // pred_region
          _
        $region20: #{tpu_custom_call.1} parent=11 // pred_fallthru
          _
        // Predicated region
        $region21: #{tpu_custom_call.1} parent=11 // pred_check
          %p266 = pneg %p135
        $region22: #{tpu_custom_call.1} parent=11 // pred_check_branch
          %268 = sbr.rel (%p266) target = $region24
        $region23: #{tpu_custom_call.1} parent=11 // pred_region
          _
        $region24: #{tpu_custom_call.1} parent=11 // pred_fallthru
          _
        // Predicated region
        $region25: #{tpu_custom_call.1} parent=11 // pred_check
          %p269 = pneg %p156
        $region26: #{tpu_custom_call.1} parent=11 // pred_check_branch
          %271 = sbr.rel (%p269) target = $region28
        $region27: #{tpu_custom_call.1} parent=11 // pred_region
          _
        $region28: #{tpu_custom_call.1} parent=11 // pred_fallthru
          _
        // Predicated region
        $region29: #{tpu_custom_call.1} parent=11 // pred_check
          %p272 = pneg %p177
        $region30: #{tpu_custom_call.1} parent=11 // pred_check_branch
          %274 = sbr.rel (%p272) target = $region32
        $region31: #{tpu_custom_call.1} parent=11 // pred_region
          _
        $region32: #{tpu_custom_call.1} parent=11 // pred_fallthru
          _
        // Predicated region
        $region33: #{tpu_custom_call.1} parent=11 // pred_check
          %p275 = pneg %p198
        $region34: #{tpu_custom_call.1} parent=11 // pred_check_branch
          %277 = sbr.rel (%p275) target = $region36
        $region35: #{tpu_custom_call.1} parent=11 // pred_region
          _
        $region36: #{tpu_custom_call.1} parent=11 // pred_fallthru
          _
        // Predicated region
        $region37: #{tpu_custom_call.1} parent=11 // pred_check
          %p278 = pneg %p219
        $region38: #{tpu_custom_call.1} parent=11 // pred_check_branch
          %280 = sbr.rel (%p278) target = $region40
        $region39: #{tpu_custom_call.1} parent=11 // pred_region
          _
        $region40: #{tpu_custom_call.1} parent=11 // pred_fallthru
          _
      $region12: #{tpu_custom_call.1} parent=5 // pred_fallthru
        _
      %p281 = scmp.lt.s32.totalorder %s20, 2
      // Predicated region
      $region41: #{tpu_custom_call.1} parent=5 // pred_check
        %p282 = pneg %p281
      $region42: #{tpu_custom_call.1} parent=5 // pred_check_branch
        %284 = sbr.rel (%p282) target = $region44
      $region43: #{tpu_custom_call.1} parent=5 // pred_region
        // Predicated region
        $region45: #{tpu_custom_call.1} parent=43 // pred_check
          %p285 = pneg %p40
        $region46: #{tpu_custom_call.1} parent=43 // pred_check_branch
          %287 = sbr.rel (%p285) target = $region48
        $region47: #{tpu_custom_call.1} parent=43 // pred_region
          %s288 = smul.u32 16, %s20
          %p289 = scmp.lt.s32.totalorder %s288, 31
          %s290 = scalar_select %p289, %s288, 31
          %s291 = smul.addr %s290, 8
          %s292 = scalar_lea.vmem %s0, %s291
          %s293 = smul.u32 16, %s20
        $region48: #{tpu_custom_call.1} parent=43 // pred_fallthru
          _
        // Predicated region
        $region49: #{tpu_custom_call.1} parent=43 // pred_check
          %p294 = pneg %p66
        $region50: #{tpu_custom_call.1} parent=43 // pred_check_branch
          %296 = sbr.rel (%p294) target = $region52
        $region51: #{tpu_custom_call.1} parent=43 // pred_region
          %s297 = smul.u32 16, %s20
          %p298 = scmp.lt.s32.totalorder %s297, 31
          %s299 = scalar_select %p298, %s297, 31
          %s300 = smul.addr %s299, 8
          %s301 = scalar_lea.vmem %s1, %s300
          %s302 = smul.u32 16, %s20
        $region52: #{tpu_custom_call.1} parent=43 // pred_fallthru
          _
      $region44: #{tpu_custom_call.1} parent=5 // pred_fallthru
        _
      %p303 = scmp.le.s32.totalorder 1, %s20
      %p304 = scmp.lt.s32.totalorder %s20, 3
      %p305 = pnand %p303, %p304
      %p306 = pneg %p305
      // Predicated region
      $region53: #{tpu_custom_call.1} parent=5 // pred_check
        _
      $region54: #{tpu_custom_call.1} parent=5 // pred_check_branch
        %308 = sbr.rel (%p305) target = $region56
      $region55: #{tpu_custom_call.1} parent=5 // pred_region
        %s309 = ssub.s32 %s20, 1
        %s310 = smul.u32 16, %s25
        %p311 = scmp.lt.s32.totalorder %s310, 31
        %s312 = scalar_select %p311, %s310, 31
        %s313 = smul.addr %s312, 8
        %s314 = scalar_lea.vmem %s0, %s313
        %p315 = pneg %p46
        %p316 = pneg %p43
        %s317 = smul.u32 16, %s25
        %p318 = scmp.lt.s32.totalorder %s317, 31
        %s319 = scalar_select %p318, %s317, 31
        %s320 = smul.addr %s319, 8
        %s321 = scalar_lea.vmem %s1, %s320
        %p322 = pneg %p72
        %p323 = pneg %p69
        %p324 = pneg %p93
        %p325 = pneg %p90
        %p326 = pneg %p114
        %p327 = pneg %p111
        %p328 = pneg %p135
        %p329 = pneg %p132
        %p330 = pneg %p156
        %p331 = pneg %p153
        %p332 = pneg %p177
        %p333 = pneg %p174
        %p334 = pneg %p198
        %p335 = pneg %p195
        %p336 = pneg %p219
        %p337 = pneg %p216
        %p338 = pneg %p245
        %p339 = pneg %p242
        %s340 = sand.u32 %s232, 1
        %s341 = scalar_lea.sflag [#allocation4], %s340
        %s342 = sand.u32 %s232, 1
        %s343 = scalar_lea.vmem [#allocation3], %s342
        %s344 = smul.u32 16, %s25
        %p345 = scmp.lt.s32.totalorder %s344, 31
        %s346 = scalar_select %p345, %s344, 31
        %s347 = smul.addr %s346, 8
        %s348 = scalar_lea.vmem %s0, %s347
        %s349 = smul.u32 16, %s25
        %s350 = smul.u32 16, %s25
        %p351 = scmp.lt.s32.totalorder %s350, 31
        %s352 = scalar_select %p351, %s350, 31
        %s353 = smul.addr %s352, 8
        %s354 = scalar_lea.vmem %s1, %s353
        %s355 = smul.u32 16, %s25
        %v357 = vld [vmem:[%s348] sm:$0xff]
        %v358 = vld [vmem:[%s348 + $0x8] sm:$0xff]
        %v359 = vld [vmem:[%s348 + $0x10] sm:$0xff]
        %v360 = vld [vmem:[%s348 + $0x18] sm:$0xff]
        %v361 = vld [vmem:[%s348 + $0x20] sm:$0xff]
        %v362 = vld [vmem:[%s348 + $0x28] sm:$0xff]
        %v363 = vld [vmem:[%s348 + $0x30] sm:$0xff]
        %v364 = vld [vmem:[%s348 + $0x38] sm:$0xff]
        %v365 = vld [vmem:[%s348 + $0x40] sm:$0xff]
        %v366 = vld [vmem:[%s348 + $0x48] sm:$0xff]
        %v367 = vld [vmem:[%s348 + $0x50] sm:$0xff]
        %v368 = vld [vmem:[%s348 + $0x58] sm:$0xff]
        %v369 = vld [vmem:[%s348 + $0x60] sm:$0xff]
        %v370 = vld [vmem:[%s348 + $0x68] sm:$0xff]
        %v371 = vld [vmem:[%s348 + $0x70] sm:$0xff]
        %v372 = vld [vmem:[%s348 + $0x78] sm:$0xff]
        %v373 = vpack.c.bf16 %v358, %v357
        %v374 = vpack.c.bf16 %v360, %v359
        %v375 = vpack.c.bf16 %v362, %v361
        %v376 = vpack.c.bf16 %v364, %v363
        %v377 = vpack.c.bf16 %v366, %v365
        %v378 = vpack.c.bf16 %v368, %v367
        %v379 = vpack.c.bf16 %v370, %v369
        %v380 = vpack.c.bf16 %v372, %v371
        %v381 = vld [vmem:[%s354] sm:$0xff]
        %v382 = vld [vmem:[%s354 + $0x8] sm:$0xff]
        %v383 = vld [vmem:[%s354 + $0x10] sm:$0xff]
        %v384 = vld [vmem:[%s354 + $0x18] sm:$0xff]
        %v385 = vld [vmem:[%s354 + $0x20] sm:$0xff]
        %v386 = vld [vmem:[%s354 + $0x28] sm:$0xff]
        %v387 = vld [vmem:[%s354 + $0x30] sm:$0xff]
        %v388 = vld [vmem:[%s354 + $0x38] sm:$0xff]
        %v389 = vld [vmem:[%s354 + $0x40] sm:$0xff]
        %v390 = vld [vmem:[%s354 + $0x48] sm:$0xff]
        %v391 = vld [vmem:[%s354 + $0x50] sm:$0xff]
        %v392 = vld [vmem:[%s354 + $0x58] sm:$0xff]
        %v393 = vld [vmem:[%s354 + $0x60] sm:$0xff]
        %v394 = vld [vmem:[%s354 + $0x68] sm:$0xff]
        %v395 = vld [vmem:[%s354 + $0x70] sm:$0xff]
        %v396 = vld [vmem:[%s354 + $0x78] sm:$0xff]
        %v397 = vpack.c.bf16 %v382, %v381
        %v398 = vpack.c.bf16 %v384, %v383
        %v399 = vpack.c.bf16 %v386, %v385
        %v400 = vpack.c.bf16 %v388, %v387
        %v401 = vpack.c.bf16 %v390, %v389
        %v402 = vpack.c.bf16 %v392, %v391
        %v403 = vpack.c.bf16 %v394, %v393
        %v404 = vpack.c.bf16 %v396, %v395
        %v405 = vld [vmem:[%s2] sm:$0xff]
        %v406 = vld [vmem:[%s2 + $0x8] sm:$0xff]
        %v407 = vld [vmem:[%s2 + $0x10] sm:$0xff]
        %v408 = vld [vmem:[%s3] sm:$0xff]
        %v410 = vunpack.c.l.b16 %v408
        %v411 = vunpack.c.h.b16 %v408
        %v412 = vpack.c.b16 %v410, %v410
        %v413 = vpack.c.b16 %v411, %v411
        %vm414 = vcmask 64512
        %v416 = vsel %vm414, %v397, 0
        %v419 = vsel %vm414, %v398, 0
        %v422 = vsel %vm414, %v399, 0
        %v425 = vsel %vm414, %v400, 0
        %v428 = vsel %vm414, %v401, 0
        %v431 = vsel %vm414, %v402, 0
        %v434 = vsel %vm414, %v403, 0
        %v437 = vsel %vm414, %v404, 0
        %vm439 = vcmask 1043456
        %v441 = vsel %vm439, %v412, 0
        %v444 = vsel %vm439, %v413, 0
        %446 = vmatprep.subr.bf16.mxu0 %v444
        %447 = vmatpush1.bf16.msra.mxu0 %v441
        %448 = vmatprep.subr.bf16.mxu0 0
        %449 = vmatpush1.bf16.msra.mxu0 0
        %450 = vmatprep.subr.bf16.mxu0 0
        %451 = vmatpush1.bf16.msra.mxu0 0
        %452 = vmatprep.subr.bf16.mxu0 0
        %453 = vmatpush1.bf16.msra.mxu0 0
        %454 = vmatprep.subr.bf16.mxu0 0
        %455 = vmatpush1.bf16.msra.mxu0 0
        %456 = vmatprep.subr.bf16.mxu0 0
        %457 = vmatpush1.bf16.msra.mxu0 0
        %458 = vmatprep.subr.bf16.mxu0 0
        %459 = vmatpush1.bf16.msra.mxu0 0
        %460 = vmatprep.subr.bf16.mxu0 0
        %461 = vmatpush1.bf16.msra.mxu0 0
        %462 = vmatprep.subr.bf16.mxu0 0
        %463 = vmatpush1.bf16.msra.mxu0 0
        %464 = vmatprep.subr.bf16.mxu0 0
        %465 = vmatpush1.bf16.msra.mxu0 0
        %466 = vmatprep.subr.bf16.mxu0 0
        %467 = vmatpush1.bf16.msra.mxu0 0
        %468 = vmatprep.subr.bf16.mxu0 0
        %469 = vmatpush1.bf16.msra.mxu0 0
        %470 = vmatprep.subr.bf16.mxu0 0
        %471 = vmatpush1.bf16.msra.mxu0 0
        %472 = vmatprep.subr.bf16.mxu0 0
        %473 = vmatpush1.bf16.msra.mxu0 0
        %474 = vmatprep.subr.bf16.mxu0 0
        %475 = vmatpush1.bf16.msra.mxu0 0
        %476 = vmatprep.subr.bf16.mxu0 0
        %477 = vmatpush1.bf16.msra.mxu0 0
        %478 = vmatprep.mubr.bf16.mxu0 0
        %479 = vmatmul.mubr.bf16.gmra.mrb[0].mxu0 %v416
        %v480 = vpop.f32.mrb[0].mxu0
        %v481 = vadd.f32 0.0, %v480
        %v482 = vpop.f32.mrb[0].mxu0
        %v483 = vadd.f32 0.0, %v482
        %v484 = vpop.f32.mrb[0].mxu0
        %v485 = vadd.f32 0.0, %v484
        %v486 = vpop.f32.mrb[0].mxu0
        %v487 = vadd.f32 0.0, %v486
        %488 = vmatprep.mubr.bf16.mxu0 0
        %489 = vmatmul.mubr.bf16.gmra.mrb[0].mxu0 %v419
        %v490 = vpop.f32.mrb[0].mxu0
        %v491 = vadd.f32 0.0, %v490
        %v492 = vpop.f32.mrb[0].mxu0
        %v493 = vadd.f32 0.0, %v492
        %v494 = vpop.f32.mrb[0].mxu0
        %v495 = vadd.f32 0.0, %v494
        %v496 = vpop.f32.mrb[0].mxu0
        %v497 = vadd.f32 0.0, %v496
        %498 = vmatprep.mubr.bf16.mxu0 0
        %499 = vmatmul.mubr.bf16.gmra.mrb[0].mxu0 %v422
        %v500 = vpop.f32.mrb[0].mxu0
        %v501 = vadd.f32 0.0, %v500
        %v502 = vpop.f32.mrb[0].mxu0
        %v503 = vadd.f32 0.0, %v502
        %v504 = vpop.f32.mrb[0].mxu0
        %v505 = vadd.f32 0.0, %v504
        %v506 = vpop.f32.mrb[0].mxu0
        %v507 = vadd.f32 0.0, %v506
        %508 = vmatprep.mubr.bf16.mxu0 0
        %509 = vmatmul.mubr.bf16.gmra.mrb[0].mxu0 %v425
        %v510 = vpop.f32.mrb[0].mxu0
        %v511 = vadd.f32 0.0, %v510
        %v512 = vpop.f32.mrb[0].mxu0
        %v513 = vadd.f32 0.0, %v512
        %v514 = vpop.f32.mrb[0].mxu0
        %v515 = vadd.f32 0.0, %v514
        %v516 = vpop.f32.mrb[0].mxu0
        %v517 = vadd.f32 0.0, %v516
        %518 = vmatprep.mubr.bf16.mxu0 0
        %519 = vmatmul.mubr.bf16.gmra.mrb[0].mxu0 %v428
        %v520 = vpop.f32.mrb[0].mxu0
        %v521 = vadd.f32 0.0, %v520
        %v522 = vpop.f32.mrb[0].mxu0
        %v523 = vadd.f32 0.0, %v522
        %v524 = vpop.f32.mrb[0].mxu0
        %v525 = vadd.f32 0.0, %v524
        %v526 = vpop.f32.mrb[0].mxu0
        %v527 = vadd.f32 0.0, %v526
        %528 = vmatprep.mubr.bf16.mxu0 0
        %529 = vmatmul.mubr.bf16.gmra.mrb[0].mxu0 %v431
        %v530 = vpop.f32.mrb[0].mxu0
        %v531 = vadd.f32 0.0, %v530
        %v532 = vpop.f32.mrb[0].mxu0
        %v533 = vadd.f32 0.0, %v532
        %v534 = vpop.f32.mrb[0].mxu0
        %v535 = vadd.f32 0.0, %v534
        %v536 = vpop.f32.mrb[0].mxu0
        %v537 = vadd.f32 0.0, %v536
        %538 = vmatprep.mubr.bf16.mxu0 0
        %539 = vmatmul.mubr.bf16.gmra.mrb[0].mxu0 %v434
        %v540 = vpop.f32.mrb[0].mxu0
        %v541 = vadd.f32 0.0, %v540
        %v542 = vpop.f32.mrb[0].mxu0
        %v543 = vadd.f32 0.0, %v542
        %v544 = vpop.f32.mrb[0].mxu0
        %v545 = vadd.f32 0.0, %v544
        %v546 = vpop.f32.mrb[0].mxu0
        %v547 = vadd.f32 0.0, %v546
        %548 = vmatprep.mubr.bf16.mxu0 0
        %549 = vmatmul.mubr.bf16.gmra.mrb[0].mxu0 %v437
        %v550 = vpop.f32.mrb[0].mxu0
        %v551 = vadd.f32 0.0, %v550
        %v552 = vpop.f32.mrb[0].mxu0
        %v553 = vadd.f32 0.0, %v552
        %v554 = vpop.f32.mrb[0].mxu0
        %v555 = vadd.f32 0.0, %v554
        %v556 = vpop.f32.mrb[0].mxu0
        %v557 = vadd.f32 0.0, %v556
        %558 = vdwg.mxu0
        %v562 = vunpack.c.l.b16 %v405
        %v563 = vunpack.c.h.b16 %v405
        %v564 = vunpack.c.l.b16 %v406
        %v565 = vunpack.c.h.b16 %v406
        %v566 = vunpack.c.l.b16 %v407
        %v567 = vunpack.c.h.b16 %v407
        %v568 = vpack.c.b16 %v564, %v562
        %v569 = vpack.c.b16 %v565, %v563
        %v570 = vpack.c.b16 %v566, %v566
        %v571 = vpack.c.b16 %v567, %v567
        %vm574 = vcmask 195584
        %v576 = vsel %vm574, %v373, 0
        %v579 = vsel %vm574, %v374, 0
        %v582 = vsel %vm574, %v375, 0
        %v585 = vsel %vm574, %v376, 0
        %v588 = vsel %vm574, %v377, 0
        %v591 = vsel %vm574, %v378, 0
        %v594 = vsel %vm574, %v379, 0
        %v597 = vsel %vm574, %v380, 0
        %v600 = vsel %vm439, %v570, 0
        %v603 = vsel %vm439, %v571, 0
        %605 = vmatprep.subr.bf16.mxu0 %v569
        %606 = vmatpush1.bf16.msra.mxu0 %v568
        %607 = vmatprep.subr.bf16.mxu0 %v603
        %608 = vmatpush1.bf16.msra.mxu0 %v600
        %609 = vmatprep.subr.bf16.mxu0 0
        %610 = vmatpush1.bf16.msra.mxu0 0
        %611 = vmatprep.subr.bf16.mxu0 0
        %612 = vmatpush1.bf16.msra.mxu0 0
        %613 = vmatprep.subr.bf16.mxu0 0
        %614 = vmatpush1.bf16.msra.mxu0 0
        %615 = vmatprep.subr.bf16.mxu0 0
        %616 = vmatpush1.bf16.msra.mxu0 0
        %617 = vmatprep.subr.bf16.mxu0 0
        %618 = vmatpush1.bf16.msra.mxu0 0
        %619 = vmatprep.subr.bf16.mxu0 0
        %620 = vmatpush1.bf16.msra.mxu0 0
        %621 = vmatprep.subr.bf16.mxu0 0
        %622 = vmatpush1.bf16.msra.mxu0 0
        %623 = vmatprep.subr.bf16.mxu0 0
        %624 = vmatpush1.bf16.msra.mxu0 0
        %625 = vmatprep.subr.bf16.mxu0 0
        %626 = vmatpush1.bf16.msra.mxu0 0
        %627 = vmatprep.subr.bf16.mxu0 0
        %628 = vmatpush1.bf16.msra.mxu0 0
        %629 = vmatprep.subr.bf16.mxu0 0
        %630 = vmatpush1.bf16.msra.mxu0 0
        %631 = vmatprep.subr.bf16.mxu0 0
        %632 = vmatpush1.bf16.msra.mxu0 0
        %633 = vmatprep.subr.bf16.mxu0 0
        %634 = vmatpush1.bf16.msra.mxu0 0
        %635 = vmatprep.subr.bf16.mxu0 0
        %636 = vmatpush1.bf16.msra.mxu0 0
        %637 = vmatprep.mubr.bf16.mxu0 0
        %638 = vmatmul.mubr.bf16.gmra.mrb[0].mxu0 %v576
        %v639 = vpop.f32.mrb[0].mxu0
        %v640 = vadd.f32 %v481, %v639
        %v641 = vpop.f32.mrb[0].mxu0
        %v642 = vadd.f32 %v483, %v641
        %v643 = vpop.f32.mrb[0].mxu0
        %v644 = vadd.f32 %v485, %v643
        %v645 = vpop.f32.mrb[0].mxu0
        %v646 = vadd.f32 %v487, %v645
        %647 = vmatprep.mubr.bf16.mxu0 0
        %648 = vmatmul.mubr.bf16.gmra.mrb[0].mxu0 %v579
        %v649 = vpop.f32.mrb[0].mxu0
        %v650 = vadd.f32 %v491, %v649
        %v651 = vpop.f32.mrb[0].mxu0
        %v652 = vadd.f32 %v493, %v651
        %v653 = vpop.f32.mrb[0].mxu0
        %v654 = vadd.f32 %v495, %v653
        %v655 = vpop.f32.mrb[0].mxu0
        %v656 = vadd.f32 %v497, %v655
        %657 = vmatprep.mubr.bf16.mxu0 0
        %658 = vmatmul.mubr.bf16.gmra.mrb[0].mxu0 %v582
        %v659 = vpop.f32.mrb[0].mxu0
        %v660 = vadd.f32 %v501, %v659
        %v661 = vpop.f32.mrb[0].mxu0
        %v662 = vadd.f32 %v503, %v661
        %v663 = vpop.f32.mrb[0].mxu0
        %v664 = vadd.f32 %v505, %v663
        %v665 = vpop.f32.mrb[0].mxu0
        %v666 = vadd.f32 %v507, %v665
        %667 = vmatprep.mubr.bf16.mxu0 0
        %668 = vmatmul.mubr.bf16.gmra.mrb[0].mxu0 %v585
        %v669 = vpop.f32.mrb[0].mxu0
        %v670 = vadd.f32 %v511, %v669
        %v671 = vpop.f32.mrb[0].mxu0
        %v672 = vadd.f32 %v513, %v671
        %v673 = vpop.f32.mrb[0].mxu0
        %v674 = vadd.f32 %v515, %v673
        %v675 = vpop.f32.mrb[0].mxu0
        %v676 = vadd.f32 %v517, %v675
        %677 = vmatprep.mubr.bf16.mxu0 0
        %678 = vmatmul.mubr.bf16.gmra.mrb[0].mxu0 %v588
        %v679 = vpop.f32.mrb[0].mxu0
        %v680 = vadd.f32 %v521, %v679
        %v681 = vpop.f32.mrb[0].mxu0
        %v682 = vadd.f32 %v523, %v681
        %v683 = vpop.f32.mrb[0].mxu0
        %v684 = vadd.f32 %v525, %v683
        %v685 = vpop.f32.mrb[0].mxu0
        %v686 = vadd.f32 %v527, %v685
        %687 = vmatprep.mubr.bf16.mxu0 0
        %688 = vmatmul.mubr.bf16.gmra.mrb[0].mxu0 %v591
        %v689 = vpop.f32.mrb[0].mxu0
        %v690 = vadd.f32 %v531, %v689
        %v691 = vpop.f32.mrb[0].mxu0
        %v692 = vadd.f32 %v533, %v691
        %v693 = vpop.f32.mrb[0].mxu0
        %v694 = vadd.f32 %v535, %v693
        %v695 = vpop.f32.mrb[0].mxu0
        %v696 = vadd.f32 %v537, %v695
        %697 = vmatprep.mubr.bf16.mxu0 0
        %698 = vmatmul.mubr.bf16.gmra.mrb[0].mxu0 %v594
        %v699 = vpop.f32.mrb[0].mxu0
        %v700 = vadd.f32 %v541, %v699
        %v701 = vpop.f32.mrb[0].mxu0
        %v702 = vadd.f32 %v543, %v701
        %v703 = vpop.f32.mrb[0].mxu0
        %v704 = vadd.f32 %v545, %v703
        %v705 = vpop.f32.mrb[0].mxu0
        %v706 = vadd.f32 %v547, %v705
        %707 = vmatprep.mubr.bf16.mxu0 0
        %708 = vmatmul.mubr.bf16.gmra.mrb[0].mxu0 %v597
        %v709 = vpop.f32.mrb[0].mxu0
        %v710 = vadd.f32 %v551, %v709
        %v711 = vpop.f32.mrb[0].mxu0
        %v712 = vadd.f32 %v553, %v711
        %v713 = vpop.f32.mrb[0].mxu0
        %v714 = vadd.f32 %v555, %v713
        %v715 = vpop.f32.mrb[0].mxu0
        %v716 = vadd.f32 %v557, %v715
        %717 = vdwg.mxu0
        %v718 = vld [vmem:[%s4] sm:$0x3]
        %v720 = vlaneseq
        %v721 = vshrl.u32 %v720, 7
        %v722 = vsub.s32 0, %v721
        %v723 = vrot.slane %v718, %v722
        %v724 = vlaneseq
        %v725 = vshrl.u32 %v724, 7
        %v726 = vsub.s32 1, %v725
        %v727 = vrot.slane %v718, %v726
        %v730 = vadd.f32 %v640, %v723
        %v731 = vadd.f32 %v642, %v727
        %v732 = vadd.f32 %v644, %v723
        %v733 = vadd.f32 %v646, %v727
        %v734 = vadd.f32 %v650, %v723
        %v735 = vadd.f32 %v652, %v727
        %v736 = vadd.f32 %v654, %v723
        %v737 = vadd.f32 %v656, %v727
        %v738 = vadd.f32 %v660, %v723
        %v739 = vadd.f32 %v662, %v727
        %v740 = vadd.f32 %v664, %v723
        %v741 = vadd.f32 %v666, %v727
        %v742 = vadd.f32 %v670, %v723
        %v743 = vadd.f32 %v672, %v727
        %v744 = vadd.f32 %v674, %v723
        %v745 = vadd.f32 %v676, %v727
        %v746 = vadd.f32 %v680, %v723
        %v747 = vadd.f32 %v682, %v727
        %v748 = vadd.f32 %v684, %v723
        %v749 = vadd.f32 %v686, %v727
        %v750 = vadd.f32 %v690, %v723
        %v751 = vadd.f32 %v692, %v727
        %v752 = vadd.f32 %v694, %v723
        %v753 = vadd.f32 %v696, %v727
        %v754 = vadd.f32 %v700, %v723
        %v755 = vadd.f32 %v702, %v727
        %v756 = vadd.f32 %v704, %v723
        %v757 = vadd.f32 %v706, %v727
        %v758 = vadd.f32 %v710, %v723
        %v759 = vadd.f32 %v712, %v727
        %v760 = vadd.f32 %v714, %v723
        %v761 = vadd.f32 %v716, %v727
        %v762 = vmax.f32 %v730, 0.0
        %v763 = vmax.f32 %v731, 0.0
        %v764 = vmax.f32 %v732, 0.0
        %v765 = vmax.f32 %v733, 0.0
        %v766 = vmax.f32 %v734, 0.0
        %v767 = vmax.f32 %v735, 0.0
        %v768 = vmax.f32 %v736, 0.0
        %v769 = vmax.f32 %v737, 0.0
        %v770 = vmax.f32 %v738, 0.0
        %v771 = vmax.f32 %v739, 0.0
        %v772 = vmax.f32 %v740, 0.0
        %v773 = vmax.f32 %v741, 0.0
        %v774 = vmax.f32 %v742, 0.0
        %v775 = vmax.f32 %v743, 0.0
        %v776 = vmax.f32 %v744, 0.0
        %v777 = vmax.f32 %v745, 0.0
        %v778 = vmax.f32 %v746, 0.0
        %v779 = vmax.f32 %v747, 0.0
        %v780 = vmax.f32 %v748, 0.0
        %v781 = vmax.f32 %v749, 0.0
        %v782 = vmax.f32 %v750, 0.0
        %v783 = vmax.f32 %v751, 0.0
        %v784 = vmax.f32 %v752, 0.0
        %v785 = vmax.f32 %v753, 0.0
        %v786 = vmax.f32 %v754, 0.0
        %v787 = vmax.f32 %v755, 0.0
        %v788 = vmax.f32 %v756, 0.0
        %v789 = vmax.f32 %v757, 0.0
        %v790 = vmax.f32 %v758, 0.0
        %v791 = vmax.f32 %v759, 0.0
        %v792 = vmax.f32 %v760, 0.0
        %v793 = vmax.f32 %v761, 0.0
        %v794 = vpack.c.bf16 %v764, %v762
        %v795 = vpack.c.bf16 %v765, %v763
        %v796 = vpack.c.bf16 %v768, %v766
        %v797 = vpack.c.bf16 %v769, %v767
        %v798 = vpack.c.bf16 %v772, %v770
        %v799 = vpack.c.bf16 %v773, %v771
        %v800 = vpack.c.bf16 %v776, %v774
        %v801 = vpack.c.bf16 %v777, %v775
        %v802 = vpack.c.bf16 %v780, %v778
        %v803 = vpack.c.bf16 %v781, %v779
        %v804 = vpack.c.bf16 %v784, %v782
        %v805 = vpack.c.bf16 %v785, %v783
        %v806 = vpack.c.bf16 %v788, %v786
        %v807 = vpack.c.bf16 %v789, %v787
        %v808 = vpack.c.bf16 %v792, %v790
        %v809 = vpack.c.bf16 %v793, %v791
        %v810 = vld [vmem:[%s5] sm:$0xff]
        %v811 = vld [vmem:[%s5 + $0x8] sm:$0xff]
        %v812 = vld [vmem:[%s5 + $0x10] sm:$0xff]
        %v813 = vld [vmem:[%s5 + $0x18] sm:$0xff]
        %v814 = vld [vmem:[%s5 + $0x20] sm:$0xff]
        %v815 = vld [vmem:[%s5 + $0x28] sm:$0xff]
        %v816 = vld [vmem:[%s5 + $0x30] sm:$0xff]
        %v817 = vld [vmem:[%s5 + $0x38] sm:$0xff]
        %v818 = vld [vmem:[%s5 + $0x40] sm:$0xff]
        %v819 = vld [vmem:[%s5 + $0x48] sm:$0xff]
        %v820 = vld [vmem:[%s5 + $0x50] sm:$0xff]
        %v821 = vld [vmem:[%s5 + $0x58] sm:$0xff]
        %v822 = vld [vmem:[%s5 + $0x60] sm:$0xff]
        %v823 = vld [vmem:[%s5 + $0x68] sm:$0xff]
        %v824 = vld [vmem:[%s5 + $0x70] sm:$0xff]
        %v825 = vld [vmem:[%s5 + $0x78] sm:$0xff]
        %v826 = vld [vmem:[%s5 + $0x80] sm:$0xff]
        %v827 = vld [vmem:[%s5 + $0x88] sm:$0xff]
        %v828 = vld [vmem:[%s5 + $0x90] sm:$0xff]
        %v829 = vld [vmem:[%s5 + $0x98] sm:$0xff]
        %v830 = vld [vmem:[%s5 + $0xa0] sm:$0xff]
        %v831 = vld [vmem:[%s5 + $0xa8] sm:$0xff]
        %v832 = vld [vmem:[%s5 + $0xb0] sm:$0xff]
        %v833 = vld [vmem:[%s5 + $0xb8] sm:$0xff]
        %v834 = vld [vmem:[%s5 + $0xc0] sm:$0xff]
        %v835 = vld [vmem:[%s5 + $0xc8] sm:$0xff]
        %v836 = vld [vmem:[%s5 + $0xd0] sm:$0xff]
        %v837 = vld [vmem:[%s5 + $0xd8] sm:$0xff]
        %v838 = vld [vmem:[%s5 + $0xe0] sm:$0xff]
        %v839 = vld [vmem:[%s5 + $0xe8] sm:$0xff]
        %v840 = vld [vmem:[%s5 + $0xf0] sm:$0xff]
        %v841 = vld [vmem:[%s5 + $0xf8] sm:$0xff]
        %v842 = vld [vmem:[%s6] sm:$0x3]
        %v844 = vlaneseq
        %v845 = vshrl.u32 %v844, 7
        %v846 = vsub.s32 0, %v845
        %v847 = vrot.slane %v842, %v846
        %v848 = vlaneseq
        %v849 = vshrl.u32 %v848, 7
        %v850 = vsub.s32 1, %v849
        %v851 = vrot.slane %v842, %v850
        %v886 = vunpack.c.l.b16 %v810
        %v887 = vunpack.c.h.b16 %v810
        %v888 = vunpack.c.l.b16 %v811
        %v889 = vunpack.c.h.b16 %v811
        %v890 = vunpack.c.l.b16 %v812
        %v891 = vunpack.c.h.b16 %v812
        %v892 = vunpack.c.l.b16 %v813
        %v893 = vunpack.c.h.b16 %v813
        %v894 = vunpack.c.l.b16 %v814
        %v895 = vunpack.c.h.b16 %v814
        %v896 = vunpack.c.l.b16 %v815
        %v897 = vunpack.c.h.b16 %v815
        %v898 = vunpack.c.l.b16 %v816
        %v899 = vunpack.c.h.b16 %v816
        %v900 = vunpack.c.l.b16 %v817
        %v901 = vunpack.c.h.b16 %v817
        %v902 = vunpack.c.l.b16 %v818
        %v903 = vunpack.c.h.b16 %v818
        %v904 = vunpack.c.l.b16 %v819
        %v905 = vunpack.c.h.b16 %v819
        %v906 = vunpack.c.l.b16 %v820
        %v907 = vunpack.c.h.b16 %v820
        %v908 = vunpack.c.l.b16 %v821
        %v909 = vunpack.c.h.b16 %v821
        %v910 = vunpack.c.l.b16 %v822
        %v911 = vunpack.c.h.b16 %v822
        %v912 = vunpack.c.l.b16 %v823
        %v913 = vunpack.c.h.b16 %v823
        %v914 = vunpack.c.l.b16 %v824
        %v915 = vunpack.c.h.b16 %v824
        %v916 = vunpack.c.l.b16 %v825
        %v917 = vunpack.c.h.b16 %v825
        %v918 = vunpack.c.l.b16 %v826
        %v919 = vunpack.c.h.b16 %v826
        %v920 = vunpack.c.l.b16 %v827
        %v921 = vunpack.c.h.b16 %v827
        %v922 = vunpack.c.l.b16 %v828
        %v923 = vunpack.c.h.b16 %v828
        %v924 = vunpack.c.l.b16 %v829
        %v925 = vunpack.c.h.b16 %v829
        %v926 = vunpack.c.l.b16 %v830
        %v927 = vunpack.c.h.b16 %v830
        %v928 = vunpack.c.l.b16 %v831
        %v929 = vunpack.c.h.b16 %v831
        %v930 = vunpack.c.l.b16 %v832
        %v931 = vunpack.c.h.b16 %v832
        %v932 = vunpack.c.l.b16 %v833
        %v933 = vunpack.c.h.b16 %v833
        %v934 = vunpack.c.l.b16 %v834
        %v935 = vunpack.c.h.b16 %v834
        %v936 = vunpack.c.l.b16 %v835
        %v937 = vunpack.c.h.b16 %v835
        %v938 = vunpack.c.l.b16 %v836
        %v939 = vunpack.c.h.b16 %v836
        %v940 = vunpack.c.l.b16 %v837
        %v941 = vunpack.c.h.b16 %v837
        %v942 = vunpack.c.l.b16 %v838
        %v943 = vunpack.c.h.b16 %v838
        %v944 = vunpack.c.l.b16 %v839
        %v945 = vunpack.c.h.b16 %v839
        %v946 = vunpack.c.l.b16 %v840
        %v947 = vunpack.c.h.b16 %v840
        %v948 = vunpack.c.l.b16 %v841
        %v949 = vunpack.c.h.b16 %v841
        %v950 = vpack.c.b16 %v888, %v886
        %v951 = vpack.c.b16 %v889, %v887
        %v952 = vpack.c.b16 %v892, %v890
        %v953 = vpack.c.b16 %v893, %v891
        %v954 = vpack.c.b16 %v896, %v894
        %v955 = vpack.c.b16 %v897, %v895
        %v956 = vpack.c.b16 %v900, %v898
        %v957 = vpack.c.b16 %v901, %v899
        %v958 = vpack.c.b16 %v904, %v902
        %v959 = vpack.c.b16 %v905, %v903
        %v960 = vpack.c.b16 %v908, %v906
        %v961 = vpack.c.b16 %v909, %v907
        %v962 = vpack.c.b16 %v912, %v910
        %v963 = vpack.c.b16 %v913, %v911
        %v964 = vpack.c.b16 %v916, %v914
        %v965 = vpack.c.b16 %v917, %v915
        %v966 = vpack.c.b16 %v920, %v918
        %v967 = vpack.c.b16 %v921, %v919
        %v968 = vpack.c.b16 %v924, %v922
        %v969 = vpack.c.b16 %v925, %v923
        %v970 = vpack.c.b16 %v928, %v926
        %v971 = vpack.c.b16 %v929, %v927
        %v972 = vpack.c.b16 %v932, %v930
        %v973 = vpack.c.b16 %v933, %v931
        %v974 = vpack.c.b16 %v936, %v934
        %v975 = vpack.c.b16 %v937, %v935
        %v976 = vpack.c.b16 %v940, %v938
        %v977 = vpack.c.b16 %v941, %v939
        %v978 = vpack.c.b16 %v944, %v942
        %v979 = vpack.c.b16 %v945, %v943
        %v980 = vpack.c.b16 %v948, %v946
        %v981 = vpack.c.b16 %v949, %v947
        %1014 = vmatprep.subr.bf16.mxu0 %v951
        %1015 = vmatpush1.bf16.msra.mxu0 %v950
        %1016 = vmatprep.subr.bf16.mxu0 %v953
        %1017 = vmatpush1.bf16.msra.mxu0 %v952
        %1018 = vmatprep.subr.bf16.mxu0 %v955
        %1019 = vmatpush1.bf16.msra.mxu0 %v954
        %1020 = vmatprep.subr.bf16.mxu0 %v957
        %1021 = vmatpush1.bf16.msra.mxu0 %v956
        %1022 = vmatprep.subr.bf16.mxu0 %v959
        %1023 = vmatpush1.bf16.msra.mxu0 %v958
        %1024 = vmatprep.subr.bf16.mxu0 %v961
        %1025 = vmatpush1.bf16.msra.mxu0 %v960
        %1026 = vmatprep.subr.bf16.mxu0 %v963
        %1027 = vmatpush1.bf16.msra.mxu0 %v962
        %1028 = vmatprep.subr.bf16.mxu0 %v965
        %1029 = vmatpush1.bf16.msra.mxu0 %v964
        %1030 = vmatprep.subr.bf16.mxu0 %v967
        %1031 = vmatpush1.bf16.msra.mxu0 %v966
        %1032 = vmatprep.subr.bf16.mxu0 %v969
        %1033 = vmatpush1.bf16.msra.mxu0 %v968
        %1034 = vmatprep.subr.bf16.mxu0 %v971
        %1035 = vmatpush1.bf16.msra.mxu0 %v970
        %1036 = vmatprep.subr.bf16.mxu0 %v973
        %1037 = vmatpush1.bf16.msra.mxu0 %v972
        %1038 = vmatprep.subr.bf16.mxu0 %v975
        %1039 = vmatpush1.bf16.msra.mxu0 %v974
        %1040 = vmatprep.subr.bf16.mxu0 %v977
        %1041 = vmatpush1.bf16.msra.mxu0 %v976
        %1042 = vmatprep.subr.bf16.mxu0 %v979
        %1043 = vmatpush1.bf16.msra.mxu0 %v978
        %1044 = vmatprep.subr.bf16.mxu0 %v981
        %1045 = vmatpush1.bf16.msra.mxu0 %v980
        %1046 = vmatprep.mubr.bf16.mxu0 %v795
        %1047 = vmatmul.mubr.bf16.gmra.mrb[0].mxu0 %v794
        %v1048 = vpop.f32.mrb[0].mxu0
        %v1049 = vadd.f32 %v847, %v1048
        %v1050 = vpop.f32.mrb[0].mxu0
        %v1051 = vadd.f32 %v851, %v1050
        %v1052 = vpop.f32.mrb[0].mxu0
        %v1053 = vadd.f32 %v847, %v1052
        %v1054 = vpop.f32.mrb[0].mxu0
        %v1055 = vadd.f32 %v851, %v1054
        %1056 = vmatprep.mubr.bf16.mxu0 %v797
        %1057 = vmatmul.mubr.bf16.gmra.mrb[0].mxu0 %v796
        %v1058 = vpop.f32.mrb[0].mxu0
        %v1059 = vadd.f32 %v847, %v1058
        %v1060 = vpop.f32.mrb[0].mxu0
        %v1061 = vadd.f32 %v851, %v1060
        %v1062 = vpop.f32.mrb[0].mxu0
        %v1063 = vadd.f32 %v847, %v1062
        %v1064 = vpop.f32.mrb[0].mxu0
        %v1065 = vadd.f32 %v851, %v1064
        %1066 = vmatprep.mubr.bf16.mxu0 %v799
        %1067 = vmatmul.mubr.bf16.gmra.mrb[0].mxu0 %v798
        %v1068 = vpop.f32.mrb[0].mxu0
        %v1069 = vadd.f32 %v847, %v1068
        %v1070 = vpop.f32.mrb[0].mxu0
        %v1071 = vadd.f32 %v851, %v1070
        %v1072 = vpop.f32.mrb[0].mxu0
        %v1073 = vadd.f32 %v847, %v1072
        %v1074 = vpop.f32.mrb[0].mxu0
        %v1075 = vadd.f32 %v851, %v1074
        %1076 = vmatprep.mubr.bf16.mxu0 %v801
        %1077 = vmatmul.mubr.bf16.gmra.mrb[0].mxu0 %v800
        %v1078 = vpop.f32.mrb[0].mxu0
        %v1079 = vadd.f32 %v847, %v1078
        %v1080 = vpop.f32.mrb[0].mxu0
        %v1081 = vadd.f32 %v851, %v1080
        %v1082 = vpop.f32.mrb[0].mxu0
        %v1083 = vadd.f32 %v847, %v1082
        %v1084 = vpop.f32.mrb[0].mxu0
        %v1085 = vadd.f32 %v851, %v1084
        %1086 = vmatprep.mubr.bf16.mxu0 %v803
        %1087 = vmatmul.mubr.bf16.gmra.mrb[0].mxu0 %v802
        %v1088 = vpop.f32.mrb[0].mxu0
        %v1089 = vadd.f32 %v847, %v1088
        %v1090 = vpop.f32.mrb[0].mxu0
        %v1091 = vadd.f32 %v851, %v1090
        %v1092 = vpop.f32.mrb[0].mxu0
        %v1093 = vadd.f32 %v847, %v1092
        %v1094 = vpop.f32.mrb[0].mxu0
        %v1095 = vadd.f32 %v851, %v1094
        %1096 = vmatprep.mubr.bf16.mxu0 %v805
        %1097 = vmatmul.mubr.bf16.gmra.mrb[0].mxu0 %v804
        %v1098 = vpop.f32.mrb[0].mxu0
        %v1099 = vadd.f32 %v847, %v1098
        %v1100 = vpop.f32.mrb[0].mxu0
        %v1101 = vadd.f32 %v851, %v1100
        %v1102 = vpop.f32.mrb[0].mxu0
        %v1103 = vadd.f32 %v847, %v1102
        %v1104 = vpop.f32.mrb[0].mxu0
        %v1105 = vadd.f32 %v851, %v1104
        %1106 = vmatprep.mubr.bf16.mxu0 %v807
        %1107 = vmatmul.mubr.bf16.gmra.mrb[0].mxu0 %v806
        %v1108 = vpop.f32.mrb[0].mxu0
        %v1109 = vadd.f32 %v847, %v1108
        %v1110 = vpop.f32.mrb[0].mxu0
        %v1111 = vadd.f32 %v851, %v1110
        %v1112 = vpop.f32.mrb[0].mxu0
        %v1113 = vadd.f32 %v847, %v1112
        %v1114 = vpop.f32.mrb[0].mxu0
        %v1115 = vadd.f32 %v851, %v1114
        %1116 = vmatprep.mubr.bf16.mxu0 %v809
        %1117 = vmatmul.mubr.bf16.gmra.mrb[0].mxu0 %v808
        %v1118 = vpop.f32.mrb[0].mxu0
        %v1119 = vadd.f32 %v847, %v1118
        %v1120 = vpop.f32.mrb[0].mxu0
        %v1121 = vadd.f32 %v851, %v1120
        %v1122 = vpop.f32.mrb[0].mxu0
        %v1123 = vadd.f32 %v847, %v1122
        %v1124 = vpop.f32.mrb[0].mxu0
        %v1125 = vadd.f32 %v851, %v1124
        %1126 = vdwg.mxu0
        %v1127 = vmax.f32 %v1049, 0.0
        %v1128 = vmax.f32 %v1051, 0.0
        %v1129 = vmax.f32 %v1053, 0.0
        %v1130 = vmax.f32 %v1055, 0.0
        %v1131 = vmax.f32 %v1059, 0.0
        %v1132 = vmax.f32 %v1061, 0.0
        %v1133 = vmax.f32 %v1063, 0.0
        %v1134 = vmax.f32 %v1065, 0.0
        %v1135 = vmax.f32 %v1069, 0.0
        %v1136 = vmax.f32 %v1071, 0.0
        %v1137 = vmax.f32 %v1073, 0.0
        %v1138 = vmax.f32 %v1075, 0.0
        %v1139 = vmax.f32 %v1079, 0.0
        %v1140 = vmax.f32 %v1081, 0.0
        %v1141 = vmax.f32 %v1083, 0.0
        %v1142 = vmax.f32 %v1085, 0.0
        %v1143 = vmax.f32 %v1089, 0.0
        %v1144 = vmax.f32 %v1091, 0.0
        %v1145 = vmax.f32 %v1093, 0.0
        %v1146 = vmax.f32 %v1095, 0.0
        %v1147 = vmax.f32 %v1099, 0.0
        %v1148 = vmax.f32 %v1101, 0.0
        %v1149 = vmax.f32 %v1103, 0.0
        %v1150 = vmax.f32 %v1105, 0.0
        %v1151 = vmax.f32 %v1109, 0.0
        %v1152 = vmax.f32 %v1111, 0.0
        %v1153 = vmax.f32 %v1113, 0.0
        %v1154 = vmax.f32 %v1115, 0.0
        %v1155 = vmax.f32 %v1119, 0.0
        %v1156 = vmax.f32 %v1121, 0.0
        %v1157 = vmax.f32 %v1123, 0.0
        %v1158 = vmax.f32 %v1125, 0.0
        %v1159 = vld [vmem:[%s7] sm:$0x3]
        %v1161 = vlaneseq
        %v1162 = vshrl.u32 %v1161, 7
        %v1163 = vsub.s32 0, %v1162
        %v1164 = vrot.slane %v1159, %v1163
        %v1165 = vlaneseq
        %v1166 = vshrl.u32 %v1165, 7
        %v1167 = vsub.s32 1, %v1166
        %v1168 = vrot.slane %v1159, %v1167
        %v1171 = vmul.f32 %v1127, %v1164
        %v1172 = vmul.f32 %v1128, %v1168
        %v1173 = vmul.f32 %v1129, %v1164
        %v1174 = vmul.f32 %v1130, %v1168
        %v1175 = vmul.f32 %v1131, %v1164
        %v1176 = vmul.f32 %v1132, %v1168
        %v1177 = vmul.f32 %v1133, %v1164
        %v1178 = vmul.f32 %v1134, %v1168
        %v1179 = vmul.f32 %v1135, %v1164
        %v1180 = vmul.f32 %v1136, %v1168
        %v1181 = vmul.f32 %v1137, %v1164
        %v1182 = vmul.f32 %v1138, %v1168
        %v1183 = vmul.f32 %v1139, %v1164
        %v1184 = vmul.f32 %v1140, %v1168
        %v1185 = vmul.f32 %v1141, %v1164
        %v1186 = vmul.f32 %v1142, %v1168
        %v1187 = vmul.f32 %v1143, %v1164
        %v1188 = vmul.f32 %v1144, %v1168
        %v1189 = vmul.f32 %v1145, %v1164
        %v1190 = vmul.f32 %v1146, %v1168
        %v1191 = vmul.f32 %v1147, %v1164
        %v1192 = vmul.f32 %v1148, %v1168
        %v1193 = vmul.f32 %v1149, %v1164
        %v1194 = vmul.f32 %v1150, %v1168
        %v1195 = vmul.f32 %v1151, %v1164
        %v1196 = vmul.f32 %v1152, %v1168
        %v1197 = vmul.f32 %v1153, %v1164
        %v1198 = vmul.f32 %v1154, %v1168
        %v1199 = vmul.f32 %v1155, %v1164
        %v1200 = vmul.f32 %v1156, %v1168
        %v1201 = vmul.f32 %v1157, %v1164
        %v1202 = vmul.f32 %v1158, %v1168
        %v1203 = vadd.f32 %v1171, %v1172
        %1204 = vadd.xlane.f32.xlu0 %v1203
        %v1205 = vpop.xlane.xlu0 %1204
        %v1206 = vadd.f32 %v1173, %v1174
        %1207 = vadd.xlane.f32.xlu0 %v1206
        %v1208 = vpop.xlane.xlu0 %1207
        %v1209 = vadd.f32 %v1175, %v1176
        %1210 = vadd.xlane.f32.xlu0 %v1209
        %v1211 = vpop.xlane.xlu0 %1210
        %v1212 = vadd.f32 %v1177, %v1178
        %1213 = vadd.xlane.f32.xlu0 %v1212
        %v1214 = vpop.xlane.xlu0 %1213
        %v1215 = vadd.f32 %v1179, %v1180
        %1216 = vadd.xlane.f32.xlu0 %v1215
        %v1217 = vpop.xlane.xlu0 %1216
        %v1218 = vadd.f32 %v1181, %v1182
        %1219 = vadd.xlane.f32.xlu0 %v1218
        %v1220 = vpop.xlane.xlu0 %1219
        %v1221 = vadd.f32 %v1183, %v1184
        %1222 = vadd.xlane.f32.xlu0 %v1221
        %v1223 = vpop.xlane.xlu0 %1222
        %v1224 = vadd.f32 %v1185, %v1186
        %1225 = vadd.xlane.f32.xlu0 %v1224
        %v1226 = vpop.xlane.xlu0 %1225
        %v1227 = vadd.f32 %v1187, %v1188
        %1228 = vadd.xlane.f32.xlu0 %v1227
        %v1229 = vpop.xlane.xlu0 %1228
        %v1230 = vadd.f32 %v1189, %v1190
        %1231 = vadd.xlane.f32.xlu0 %v1230
        %v1232 = vpop.xlane.xlu0 %1231
        %v1233 = vadd.f32 %v1191, %v1192
        %1234 = vadd.xlane.f32.xlu0 %v1233
        %v1235 = vpop.xlane.xlu0 %1234
        %v1236 = vadd.f32 %v1193, %v1194
        %1237 = vadd.xlane.f32.xlu0 %v1236
        %v1238 = vpop.xlane.xlu0 %1237
        %v1239 = vadd.f32 %v1195, %v1196
        %1240 = vadd.xlane.f32.xlu0 %v1239
        %v1241 = vpop.xlane.xlu0 %1240
        %v1242 = vadd.f32 %v1197, %v1198
        %1243 = vadd.xlane.f32.xlu0 %v1242
        %v1244 = vpop.xlane.xlu0 %1243
        %v1245 = vadd.f32 %v1199, %v1200
        %1246 = vadd.xlane.f32.xlu0 %v1245
        %v1247 = vpop.xlane.xlu0 %1246
        %v1248 = vadd.f32 %v1201, %v1202
        %1249 = vadd.xlane.f32.xlu0 %v1248
        %v1250 = vpop.xlane.xlu0 %1249
        %v1251 = vld [vmem:[#allocation2] sm:$0x1]
        %1253 = vset.pattern.permute.xlu0 0
        %1254 = vperm.xlu0 %1253, %v1251
        %v1255 = vpop.permute.xlu0 %1254
        %v1257 = vlaneseq
        %v1258 = vshrl.u32 %v1257, 7
        %v1259 = vsub.s32 0, %v1258
        %v1260 = vrot.slane %v1255, %v1259
        %v1261 = vadd.f32 %v1205, %v1260
        %v1262 = vadd.f32 %v1208, %v1260
        %v1263 = vadd.f32 %v1211, %v1260
        %v1264 = vadd.f32 %v1214, %v1260
        %v1265 = vadd.f32 %v1217, %v1260
        %v1266 = vadd.f32 %v1220, %v1260
        %v1267 = vadd.f32 %v1223, %v1260
        %v1268 = vadd.f32 %v1226, %v1260
        %v1269 = vadd.f32 %v1229, %v1260
        %v1270 = vadd.f32 %v1232, %v1260
        %v1271 = vadd.f32 %v1235, %v1260
        %v1272 = vadd.f32 %v1238, %v1260
        %v1273 = vadd.f32 %v1241, %v1260
        %v1274 = vadd.f32 %v1244, %v1260
        %v1275 = vadd.f32 %v1247, %v1260
        %v1276 = vadd.f32 %v1250, %v1260
        %v1293 = vlaneseq
        %v1294 = vand.u32 %v1293, 127
        %v1295 = vlaneseq
        %v1296 = vshrl.u32 %v1295, 7
        %v1297 = vsub.s32 %v1294, %v1296
        %v1298 = vrot.slane %v1261, %v1297
        %v1299 = vadd.s32 %v1294, 4294967288
        %v1300 = vlaneseq
        %v1301 = vshrl.u32 %v1300, 7
        %v1302 = vsub.s32 %v1299, %v1301
        %v1303 = vrot.slane %v1262, %v1302
        %vm1304 = vcmask 130112
        %v1305 = vsel %vm1304, %v1303, %v1298
        %v1306 = vadd.s32 %v1294, 4294967280
        %v1307 = vlaneseq
        %v1308 = vshrl.u32 %v1307, 7
        %v1309 = vsub.s32 %v1306, %v1308
        %v1310 = vrot.slane %v1263, %v1309
        %vm1311 = vcmask 195712
        %v1312 = vsel %vm1311, %v1310, %v1305
        %v1313 = vadd.s32 %v1294, 4294967272
        %v1314 = vlaneseq
        %v1315 = vshrl.u32 %v1314, 7
        %v1316 = vsub.s32 %v1313, %v1315
        %v1317 = vrot.slane %v1264, %v1316
        %vm1318 = vcmask 261312
        %v1319 = vsel %vm1318, %v1317, %v1312
        %v1320 = vadd.s32 %v1294, 4294967264
        %v1321 = vlaneseq
        %v1322 = vshrl.u32 %v1321, 7
        %v1323 = vsub.s32 %v1320, %v1322
        %v1324 = vrot.slane %v1265, %v1323
        %vm1325 = vcmask 326912
        %v1326 = vsel %vm1325, %v1324, %v1319
        %v1327 = vadd.s32 %v1294, 4294967256
        %v1328 = vlaneseq
        %v1329 = vshrl.u32 %v1328, 7
        %v1330 = vsub.s32 %v1327, %v1329
        %v1331 = vrot.slane %v1266, %v1330
        %vm1332 = vcmask 392512
        %v1333 = vsel %vm1332, %v1331, %v1326
        %v1334 = vadd.s32 %v1294, 4294967248
        %v1335 = vlaneseq
        %v1336 = vshrl.u32 %v1335, 7
        %v1337 = vsub.s32 %v1334, %v1336
        %v1338 = vrot.slane %v1267, %v1337
        %vm1339 = vcmask 458112
        %v1340 = vsel %vm1339, %v1338, %v1333
        %v1341 = vadd.s32 %v1294, 4294967240
        %v1342 = vlaneseq
        %v1343 = vshrl.u32 %v1342, 7
        %v1344 = vsub.s32 %v1341, %v1343
        %v1345 = vrot.slane %v1268, %v1344
        %vm1346 = vcmask 523712
        %v1347 = vsel %vm1346, %v1345, %v1340
        %v1348 = vadd.s32 %v1294, 4294967232
        %v1349 = vlaneseq
        %v1350 = vshrl.u32 %v1349, 7
        %v1351 = vsub.s32 %v1348, %v1350
        %v1352 = vrot.slane %v1269, %v1351
        %vm1353 = vcmask 589312
        %v1354 = vsel %vm1353, %v1352, %v1347
        %v1355 = vadd.s32 %v1294, 4294967224
        %v1356 = vlaneseq
        %v1357 = vshrl.u32 %v1356, 7
        %v1358 = vsub.s32 %v1355, %v1357
        %v1359 = vrot.slane %v1270, %v1358
        %vm1360 = vcmask 654912
        %v1361 = vsel %vm1360, %v1359, %v1354
        %v1362 = vadd.s32 %v1294, 4294967216
        %v1363 = vlaneseq
        %v1364 = vshrl.u32 %v1363, 7
        %v1365 = vsub.s32 %v1362, %v1364
        %v1366 = vrot.slane %v1271, %v1365
        %vm1367 = vcmask 720512
        %v1368 = vsel %vm1367, %v1366, %v1361
        %v1369 = vadd.s32 %v1294, 4294967208
        %v1370 = vlaneseq
        %v1371 = vshrl.u32 %v1370, 7
        %v1372 = vsub.s32 %v1369, %v1371
        %v1373 = vrot.slane %v1272, %v1372
        %vm1374 = vcmask 786112
        %v1375 = vsel %vm1374, %v1373, %v1368
        %v1376 = vadd.s32 %v1294, 4294967200
        %v1377 = vlaneseq
        %v1378 = vshrl.u32 %v1377, 7
        %v1379 = vsub.s32 %v1376, %v1378
        %v1380 = vrot.slane %v1273, %v1379
        %vm1381 = vcmask 851712
        %v1382 = vsel %vm1381, %v1380, %v1375
        %v1383 = vadd.s32 %v1294, 4294967192
        %v1384 = vlaneseq
        %v1385 = vshrl.u32 %v1384, 7
        %v1386 = vsub.s32 %v1383, %v1385
        %v1387 = vrot.slane %v1274, %v1386
        %vm1388 = vcmask 917312
        %v1389 = vsel %vm1388, %v1387, %v1382
        %v1390 = vadd.s32 %v1294, 4294967184
        %v1391 = vlaneseq
        %v1392 = vshrl.u32 %v1391, 7
        %v1393 = vsub.s32 %v1390, %v1392
        %v1394 = vrot.slane %v1275, %v1393
        %vm1395 = vcmask 982912
        %v1396 = vsel %vm1395, %v1394, %v1389
        %v1397 = vadd.s32 %v1294, 4294967176
        %v1398 = vlaneseq
        %v1399 = vshrl.u32 %v1398, 7
        %v1400 = vsub.s32 %v1397, %v1399
        %v1401 = vrot.slane %v1276, %v1400
        %vm1402 = vcmask 1048512
        %v1403 = vsel %vm1402, %v1401, %v1396
        %1405 = vst [vmem:[%s343] sm:$0x1] %v1403
        %s1406 = sand.u32 %s232, 1
        %s1407 = scalar_lea.sflag [#allocation4], %s1406
        %s1408 = sand.u32 %s232, 1
        %s1409 = scalar_lea.vmem [#allocation3], %s1408
        // Predicated region
        $region57: #{tpu_custom_call.1} parent=55 // pred_check
          %p1410 = pneg %p242
        $region58: #{tpu_custom_call.1} parent=55 // pred_check_branch
          %1412 = sbr.rel (%p1410) target = $region60
        $region59: #{tpu_custom_call.1} parent=55 // pred_region
          %s1414 = ssub.s32 16, 16
          %1415 = vsyncadd %s1407, %s1414
          %s1416 = smul.addr %s25, 16
          %s1417 = scalar_lea.hbm %s9, %s1416
          %s1419 = sshll.u32 %s1409, 4
          %s1420 = int_to_ptr.vmem [resolvable:$true] %s1419
          %1422 = dma.vmem_to_hbm [thread:$0]  %s1420, 16, %s1417, %s1407
        $region60: #{tpu_custom_call.1} parent=55 // pred_fallthru
          _
      $region56: #{tpu_custom_call.1} parent=5 // pred_fallthru
        _
      %p1423 = scmp.le.s32.totalorder 2, %s20
      // Predicated region
      $region61: #{tpu_custom_call.1} parent=5 // pred_check
        %p1424 = pneg %p1423
      $region62: #{tpu_custom_call.1} parent=5 // pred_check_branch
        %1426 = sbr.rel (%p1424) target = $region64
      $region63: #{tpu_custom_call.1} parent=5 // pred_region
        %s1427 = ssub.s32 %s20, 2
        // Predicated region
        $region65: #{tpu_custom_call.1} parent=63 // pred_check
          %p1428 = pneg %p248
        $region66: #{tpu_custom_call.1} parent=63 // pred_check_branch
          %1430 = sbr.rel (%p1428) target = $region68
        $region67: #{tpu_custom_call.1} parent=63 // pred_region
          %s1431 = sand.u32 %s233, 1
          %s1432 = scalar_lea.sflag [#allocation4], %s1431
          %s1433 = sand.u32 %s233, 1
          %s1434 = scalar_lea.vmem [#allocation3], %s1433
          %1435 = dma.done %s1432, 16
        $region68: #{tpu_custom_call.1} parent=63 // pred_fallthru
          _
      $region64: #{tpu_custom_call.1} parent=5 // pred_fallthru
        _
    $region6: #{tpu_custom_call.1} parent=1 // loop_footer
      %s24 = sadd.s32 1, %s20
    $region7: #{tpu_custom_call.1} parent=1 // loop_footer_branch
      %19 = sbr.rel target = $region3
    $region8: #{tpu_custom_call.1} parent=1 // loop_exit
      _
    %1436 = vsyncpa [#allocation4], 1
    %s1437 = scalar_lea.sflag [#allocation4], 1
    %1438 = vsyncpa %s1437, 1

</llo_original>
